<compile_context>
chip_gen: v6e
topology: v6e:2x2x1
jax: 0.10.0
libtpu: 0.0.40
codegen_flags: <defaults>
</compile_context>

<pallas_src>
import functools
import math

import jax
import jax.numpy as jnp
from jax.experimental import pallas as pl
from jax.experimental.pallas import tpu as pltpu


HIDDEN = 250   # fc1 / fc2 width fixed by the module spec
HP = 256       # lane-padded hidden width (multiple of 128)
DP = 128       # lane-padded concat(x, a) width


# ----------------------------- Pallas kernel ------------------------------ #

def _softplus(x):
    # numerically stable softplus (matches F.softplus)
    return jnp.maximum(x, 0.0) + jnp.log1p(jnp.exp(-jnp.abs(x)))


def _activate(x, kind):
    if kind == "relu":
        return jnp.maximum(x, 0.0)
    elif kind == "swish":
        return x * jax.nn.sigmoid(x)
    raise NotImplementedError(kind)


def _gvn3_kernel(xa_ref, w12_ref, wh_ref, b_ref, out_ref, *,
                 head, activation, bound_var):
    f32 = jnp.float32
    bf16 = jnp.bfloat16

    xa = xa_ref[...].astype(bf16)                      # [TB, DP]

    # static slices into the packed bf16 weight slab (zero-cost views)
    w1 = w12_ref[0:DP, :]                              # [DP, HP]  bf16
    w2 = w12_ref[DP:DP + HP, :]                        # [HP, HP]  bf16
    wh = wh_ref[...]                                   # [HP, head] bf16 fused exp|var

    # f32 bias / bound / mask rows (elementwise math stays f32 on all chips)
    b1 = b_ref[0:1, :]                                 # [1, HP]
    b2 = b_ref[1:2, :]                                 # [1, HP]
    bh = b_ref[2:3, 0:head]                            # [1, head]

    h = _activate(jnp.dot(xa, w1, preferred_element_type=f32) + b1, activation)
    h = _activate(jnp.dot(h.astype(bf16), w2, preferred_element_type=f32) + b2,
                  activation)

    # fused head: columns [0, S) = exp, [S, 2S) = logvar, rest zero-padded
    h3 = jnp.dot(h.astype(bf16), wh, preferred_element_type=f32) + bh  # [TB, head]

    if bound_var:
        maxlv = b_ref[3:4, 0:head]
        minlv = b_ref[4:5, 0:head]
        lvmask = b_ref[5:6, 0:head]                    # 1.0 on logvar lanes
        lv = maxlv - _softplus(maxlv - h3)
        lv = minlv + _softplus(lv - minlv)
        out = jnp.where(lvmask != 0.0, lv, h3)
    else:
        out = h3

    out_ref[...] = out.astype(out_ref.dtype)


# ------------------------------- wrapper ----------------------------------- #

def _round_up(n, m):
    return ((n + m - 1) // m) * m


def pack_params(p, state_dim, num_actions):
    """Pack parameters into bf16 weight slabs + an f32 bias/bound/mask slab."""
    din = state_dim + num_actions
    assert din <= DP, f"state_dim + num_actions = {din} must be <= {DP}"
    head = max(128, _round_up(2 * state_dim, 128))     # lane-dense head width
    bw = max(HP, head)                                 # bias slab lane width

    # --- bf16 weight slab #1: fc1 | fc2, stacked along rows ---
    w1 = jnp.zeros((DP, HP), jnp.float32).at[:din, :HIDDEN].set(p["w1"])
    w2 = jnp.zeros((HP, HP), jnp.float32).at[:HIDDEN, :HIDDEN].set(p["w2"])
    w12 = jnp.concatenate([w1, w2], axis=0).astype(jnp.bfloat16)   # [DP+HP, HP]

    # --- bf16 weight slab #2: fused exp|logvar head (head lanes only) ---
    wh = jnp.zeros((HP, head), jnp.float32)
    wh = wh.at[:HIDDEN, :state_dim].set(p["w_exp"])
    wh = wh.at[:HIDDEN, state_dim:2 * state_dim].set(p["w_var"])
    wh = wh.astype(jnp.bfloat16)                                   # [HP, head]

    # --- f32 bias / bound / mask slab ---
    b_slab = jnp.zeros((8, bw), jnp.float32)
    b_slab = b_slab.at[0, :HIDDEN].set(p["b1"])
    b_slab = b_slab.at[1, :HIDDEN].set(p["b2"])
    b_slab = b_slab.at[2, :state_dim].set(p["b_exp"])
    b_slab = b_slab.at[2, state_dim:2 * state_dim].set(p["b_var"])
    b_slab = b_slab.at[3, state_dim:2 * state_dim].set(p["max_logvar"])
    b_slab = b_slab.at[4, state_dim:2 * state_dim].set(p["min_logvar"])
    b_slab = b_slab.at[5, state_dim:2 * state_dim].set(1.0)        # logvar-lane mask
    return w12, wh, b_slab, head


def _pick_batch_tile(B):
    """8-aligned whole batch when small; >=2 grid steps (v7x megacore) and
    TB <= 1024 for moderate/large batches (per-step overhead ~0.35 us)."""
    B8 = _round_up(B, 8)
    if B8 <= 256:
        return B8, B8
    half = _round_up((B8 + 1) // 2, 8)
    TB = min(1024, half)
    Bp = _round_up(B8, TB)
    return TB, Bp


def gvn3_forward(packed, x, a, *, state_dim, activation="relu", bound_var=True):
    w12, wh, b_slab, head = packed
    assert 2 * state_dim <= head
    B = x.shape[0]
    din = x.shape[1] + a.shape[1]
    bw = b_slab.shape[1]

    TB, Bp = _pick_batch_tile(B)

    # single fused concat + zero-pad to a lane-dense [Bp, DP] slab
    xa = jnp.concatenate([x, a], axis=1).astype(jnp.float32)
    xa_p = jnp.pad(xa, ((0, Bp - B), (0, DP - din)))

    kernel = functools.partial(
        _gvn3_kernel, head=head, activation=activation, bound_var=bound_var
    )

    out = pl.pallas_call(
        kernel,
        out_shape=jax.ShapeDtypeStruct((Bp, head), jnp.float32),
        grid_spec=pltpu.PrefetchScalarGridSpec(
            num_scalar_prefetch=0,
            grid=(Bp // TB,),
            in_specs=[
                pl.BlockSpec((TB, DP), lambda i: (i, 0)),            # activations
                pl.BlockSpec((DP + HP, HP), lambda i: (0, 0)),       # fc1|fc2 slab (bf16)
                pl.BlockSpec((HP, head), lambda i: (0, 0)),          # head slab   (bf16)
                pl.BlockSpec((8, bw), lambda i: (0, 0)),             # bias/bounds/mask
            ],
            out_specs=pl.BlockSpec((TB, head), lambda i: (i, 0)),
        ),
        compiler_params=pltpu.CompilerParams(
            dimension_semantics=("parallel",),
        ),
    )(xa_p, w12, wh, b_slab)

    exp = out[:B, :state_dim]
    logvar = out[:B, state_dim:2 * state_dim]
    return exp, logvar


# --------------------------- parameter init -------------------------------- #

def _xavier_uniform(key, fan_in, fan_out):
    bound = math.sqrt(6.0 / (fan_in + fan_out))
    # stored as [in, out] so the kernel computes x @ W (== PyTorch x @ W.T)
    return jax.random.uniform(key, (fan_in, fan_out), jnp.float32, -bound, bound)


def init_params(key, state_dim, num_actions):
    din = state_dim + num_actions
    k1, k2, k3, k4 = jax.random.split(key, 4)
    return {
        "w1": _xavier_uniform(k1, din, HIDDEN),
        "b1": jnp.zeros((HIDDEN,), jnp.float32),
        "w2": _xavier_uniform(k2, HIDDEN, HIDDEN),
        "b2": jnp.zeros((HIDDEN,), jnp.float32),
        "w_exp": _xavier_uniform(k3, HIDDEN, state_dim),
        "b_exp": jnp.zeros((state_dim,), jnp.float32),
        "w_var": _xavier_uniform(k4, HIDDEN, state_dim),
        "b_var": jnp.zeros((state_dim,), jnp.float32),
        # torch shape is (2,): only broadcasts against logvar when state_dim == 2
        "max_logvar": jnp.full((state_dim,), 0.5, jnp.float32),
        "min_logvar": jnp.full((state_dim,), -10.0, jnp.float32),
    }


# -------------------------- pure-JAX reference ----------------------------- #

def gvn3_forward_ref(p, x, a, activation="relu", bound_var=True):
    def act(v):
        return jax.nn.relu(v) if activation == "relu" else v * jax.nn.sigmoid(v)

    xa = jnp.concatenate([x, a], axis=1)
    h = act(xa @ p["w1"] + p["b1"])
    h = act(h @ p["w2"] + p["b2"])
    exp = h @ p["w_exp"] + p["b_exp"]
    lv = h @ p["w_var"] + p["b_var"]
    if bound_var:
        lv = p["max_logvar"] - jax.nn.softplus(p["max_logvar"] - lv)
        lv = p["min_logvar"] + jax.nn.softplus(lv - p["min_logvar"])
    return exp, lv


# --------------------------------- main ------------------------------------ #

if __name__ == "__main__":
    B, STATE_DIM, NUM_ACTIONS = 8, 2, 4
    ACT = "relu"  # module also supports "swish"; relu tested here

    key = jax.random.PRNGKey(0)
    kp, kx, ka = jax.random.split(key, 3)

    params = init_params(kp, STATE_DIM, NUM_ACTIONS)
    packed = pack_params(params, STATE_DIM, NUM_ACTIONS)

    x = jax.random.normal(kx, (B, STATE_DIM), jnp.float32)
    a_idx = jax.random.randint(ka, (B,), 0, NUM_ACTIONS)
    a = jax.nn.one_hot(a_idx, NUM_ACTIONS, dtype=jnp.float32)  # Network.encode_action

    exp_out, logvar_out = gvn3_forward(packed, x, a, state_dim=STATE_DIM,
                                       activation=ACT, bound_var=True)
    jax.block_until_ready((exp_out, logvar_out))

    exp_ref, logvar_ref = gvn3_forward_ref(params, x, a, activation=ACT, bound_var=True)
    assert exp_out.shape == (B, STATE_DIM) and logvar_out.shape == (B, STATE_DIM)
    # bf16 MXU operands (f32 accumulation) -> relaxed tolerance vs the f32 reference
    assert jnp.allclose(exp_out, exp_ref, atol=2e-2, rtol=2e-2)
    assert jnp.allclose(logvar_out, logvar_ref, atol=2e-2, rtol=2e-2)

    print("KERNEL_OK")
</pallas_src>

<mosaic_0001>
module attributes {stable_mosaic.version = 11 : i64} {
  func.func @_gvn3_kernel(%arg0: i32, %arg1: memref<8x128xf32, #tpu.memory_space<vmem>>, %arg2: memref<384x256xbf16, #tpu.memory_space<vmem>>, %arg3: memref<256x128xbf16, #tpu.memory_space<vmem>>, %arg4: memref<8x256xf32, #tpu.memory_space<vmem>>, %arg5: memref<8x128xf32, #tpu.memory_space<vmem>>) attributes {dimension_semantics = [#tpu.dimension_semantics<parallel>], iteration_bounds = array<i64: 1>, scalar_prefetch = 0 : i64, scratch_operands = 0 : i64, tpu.core_type = #tpu.core_type<tc>, window_params = [{transform_indices = @transform_0, window_bounds = array<i64: 8, 128>}, {pipeline_mode = #tpu.pipeline_mode<synchronous>, transform_indices = @transform_1, window_bounds = array<i64: 384, 256>}, {pipeline_mode = #tpu.pipeline_mode<synchronous>, transform_indices = @transform_2, window_bounds = array<i64: 256, 128>}, {pipeline_mode = #tpu.pipeline_mode<synchronous>, transform_indices = @transform_3, window_bounds = array<i64: 8, 256>}, {transform_indices = @transform_4, window_bounds = array<i64: 8, 128>}]} {
    %c0 = arith.constant 0 : index
    %c0_0 = arith.constant 0 : index
    %0 = vector.load %arg1[%c0, %c0_0] : memref<8x128xf32, #tpu.memory_space<vmem>>, vector<8x128xf32>
    %1 = arith.truncf %0 : vector<8x128xf32> to vector<8x128xbf16>
    %c0_1 = arith.constant 0 : index
    %c0_2 = arith.constant 0 : index
    %2 = vector.load %arg2[%c0_1, %c0_2] : memref<384x256xbf16, #tpu.memory_space<vmem>>, vector<128x256xbf16>
    %c128 = arith.constant 128 : index
    %c0_3 = arith.constant 0 : index
    %3 = vector.load %arg2[%c128, %c0_3] : memref<384x256xbf16, #tpu.memory_space<vmem>>, vector<256x256xbf16>
    %c0_4 = arith.constant 0 : index
    %c0_5 = arith.constant 0 : index
    %4 = vector.load %arg3[%c0_4, %c0_5] : memref<256x128xbf16, #tpu.memory_space<vmem>>, vector<256x128xbf16>
    %c0_6 = arith.constant 0 : index
    %c0_7 = arith.constant 0 : index
    %5 = vector.load %arg4[%c0_6, %c0_7] : memref<8x256xf32, #tpu.memory_space<vmem>>, vector<1x256xf32>
    %c1 = arith.constant 1 : index
    %c0_8 = arith.constant 0 : index
    %6 = vector.load %arg4[%c1, %c0_8] : memref<8x256xf32, #tpu.memory_space<vmem>>, vector<1x256xf32>
    %c2 = arith.constant 2 : index
    %c0_9 = arith.constant 0 : index
    %7 = vector.load %arg4[%c2, %c0_9] : memref<8x256xf32, #tpu.memory_space<vmem>>, vector<1x128xf32>
    %cst = arith.constant dense<0.000000e+00> : vector<8x256xf32>
    %8 = tpu.matmul %1, %2, %cst {dimension_numbers = #tpu.dot_dimension_numbers<[1], [0], [0], [1], [0, 0, 1, 1], [], []>} : vector<8x128xbf16>, vector<128x256xbf16>, vector<8x256xf32> -> vector<8x256xf32>
    %9 = vector.broadcast %5 : vector<1x256xf32> to vector<8x256xf32>
    %10 = arith.addf %8, %9 : vector<8x256xf32>
    %cst_10 = arith.constant 0.000000e+00 : f32
    %11 = vector.broadcast %cst_10 : f32 to vector<8x256xf32>
    %12 = arith.maximumf %10, %11 : vector<8x256xf32>
    %13 = arith.truncf %12 : vector<8x256xf32> to vector<8x256xbf16>
    %cst_11 = arith.constant dense<0.000000e+00> : vector<8x256xf32>
    %14 = tpu.matmul %13, %3, %cst_11 {dimension_numbers = #tpu.dot_dimension_numbers<[1], [0], [0], [1], [0, 0, 1, 1], [], []>} : vector<8x256xbf16>, vector<256x256xbf16>, vector<8x256xf32> -> vector<8x256xf32>
    %15 = vector.broadcast %6 : vector<1x256xf32> to vector<8x256xf32>
    %16 = arith.addf %14, %15 : vector<8x256xf32>
    %cst_12 = arith.constant 0.000000e+00 : f32
    %17 = vector.broadcast %cst_12 : f32 to vector<8x256xf32>
    %18 = arith.maximumf %16, %17 : vector<8x256xf32>
    %19 = arith.truncf %18 : vector<8x256xf32> to vector<8x256xbf16>
    %cst_13 = arith.constant dense<0.000000e+00> : vector<8x128xf32>
    %20 = tpu.matmul %19, %4, %cst_13 {dimension_numbers = #tpu.dot_dimension_numbers<[1], [0], [0], [1], [0, 0, 1, 1], [], []>} : vector<8x256xbf16>, vector<256x128xbf16>, vector<8x128xf32> -> vector<8x128xf32>
    %21 = vector.broadcast %7 : vector<1x128xf32> to vector<8x128xf32>
    %22 = arith.addf %20, %21 : vector<8x128xf32>
    %c3 = arith.constant 3 : index
    %c0_14 = arith.constant 0 : index
    %23 = vector.load %arg4[%c3, %c0_14] : memref<8x256xf32, #tpu.memory_space<vmem>>, vector<1x128xf32>
    %c4 = arith.constant 4 : index
    %c0_15 = arith.constant 0 : index
    %24 = vector.load %arg4[%c4, %c0_15] : memref<8x256xf32, #tpu.memory_space<vmem>>, vector<1x128xf32>
    %c5 = arith.constant 5 : index
    %c0_16 = arith.constant 0 : index
    %25 = vector.load %arg4[%c5, %c0_16] : memref<8x256xf32, #tpu.memory_space<vmem>>, vector<1x128xf32>
    %26 = vector.broadcast %23 : vector<1x128xf32> to vector<8x128xf32>
    %27 = arith.subf %26, %22 : vector<8x128xf32>
    %cst_17 = arith.constant 0.000000e+00 : f32
    %28 = vector.broadcast %cst_17 : f32 to vector<8x128xf32>
    %29 = arith.maximumf %27, %28 : vector<8x128xf32>
    %30 = math.absf %27 : vector<8x128xf32>
    %cst_18 = arith.constant 0.000000e+00 : f32
    %31 = vector.broadcast %cst_18 : f32 to vector<8x128xf32>
    %32 = arith.subf %31, %30 : vector<8x128xf32>
    %33 = math.exp %32 : vector<8x128xf32>
    %34 = math.log1p %33 : vector<8x128xf32>
    %35 = arith.addf %29, %34 : vector<8x128xf32>
    %36 = vector.broadcast %23 : vector<1x128xf32> to vector<8x128xf32>
    %37 = arith.subf %36, %35 : vector<8x128xf32>
    %38 = vector.broadcast %24 : vector<1x128xf32> to vector<8x128xf32>
    %39 = arith.subf %37, %38 : vector<8x128xf32>
    %cst_19 = arith.constant 0.000000e+00 : f32
    %40 = vector.broadcast %cst_19 : f32 to vector<8x128xf32>
    %41 = arith.maximumf %39, %40 : vector<8x128xf32>
    %42 = math.absf %39 : vector<8x128xf32>
    %cst_20 = arith.constant 0.000000e+00 : f32
    %43 = vector.broadcast %cst_20 : f32 to vector<8x128xf32>
    %44 = arith.subf %43, %42 : vector<8x128xf32>
    %45 = math.exp %44 : vector<8x128xf32>
    %46 = math.log1p %45 : vector<8x128xf32>
    %47 = arith.addf %41, %46 : vector<8x128xf32>
    %48 = vector.broadcast %24 : vector<1x128xf32> to vector<8x128xf32>
    %49 = arith.addf %48, %47 : vector<8x128xf32>
    %cst_21 = arith.constant 0.000000e+00 : f32
    %50 = vector.broadcast %cst_21 : f32 to vector<1x128xf32>
    %51 = arith.cmpf one, %25, %50 : vector<1x128xf32>
    %52 = vector.shape_cast %51 : vector<1x128xi1> to vector<1x128xi1>
    %53 = vector.broadcast %52 : vector<1x128xi1> to vector<8x128xi1>
    %54 = arith.select %53, %49, %22 : vector<8x128xi1>, vector<8x128xf32>
    %c0_22 = arith.constant 0 : index
    %c0_23 = arith.constant 0 : index
    %55 = vector.load %arg5[%c0_22, %c0_23] : memref<8x128xf32, #tpu.memory_space<vmem>>, vector<8x128xf32>
    tpu.vector_store %arg5[%c0_22, %c0_23], %54 {strides = array<i32>} : memref<8x128xf32, #tpu.memory_space<vmem>>, vector<8x128xf32>,
    return
  }
  func.func @transform_0(%arg0: i32) -> (i32, i32) {
    %c0_i32 = arith.constant 0 : i32
    %c0_i32_0 = arith.constant 0 : i32
    return %arg0, %c0_i32 : i32, i32
  }
  func.func @transform_1(%arg0: i32) -> (i32, i32) {
    %c0_i32 = arith.constant 0 : i32
    %c0_i32_0 = arith.constant 0 : i32
    %c0_i32_1 = arith.constant 0 : i32
    return %c0_i32, %c0_i32_0 : i32, i32
  }
  func.func @transform_2(%arg0: i32) -> (i32, i32) {
    %c0_i32 = arith.constant 0 : i32
    %c0_i32_0 = arith.constant 0 : i32
    %c0_i32_1 = arith.constant 0 : i32
    return %c0_i32, %c0_i32_0 : i32, i32
  }
  func.func @transform_3(%arg0: i32) -> (i32, i32) {
    %c0_i32 = arith.constant 0 : i32
    %c0_i32_0 = arith.constant 0 : i32
    %c0_i32_1 = arith.constant 0 : i32
    return %c0_i32, %c0_i32_0 : i32, i32
  }
  func.func @transform_4(%arg0: i32) -> (i32, i32) {
    %c0_i32 = arith.constant 0 : i32
    %c0_i32_0 = arith.constant 0 : i32
    return %arg0, %c0_i32 : i32, i32
  }
}

</mosaic_0001>

<llo_original>
// kernel: tpu_custom_call.1
$region0: #{tpu_custom_call.1}
  #allocation0 [shape = 'u32[]', space=smem, size = 0x4, offset = 0x4, fixed_abs, tag = 'smem constant byte address 0x4 - core index']
  #allocation1 [shape = 'u32[144,128]{1,0:T(1,128)}', space=vmem, size = 0x12000, scoped, tag = 'internal scratch']
  %s0 = inlined_call_operand.hbm [shape: f32[8,128], index: 0, kind: input, shape index: {}]
  %s1 = inlined_call_operand.hbm [shape: bf16[384,256], index: 1, kind: input, shape index: {}]
  %s2 = inlined_call_operand.hbm [shape: bf16[256,128], index: 2, kind: input, shape index: {}]
  %s3 = inlined_call_operand.hbm [shape: f32[8,256], index: 3, kind: input, shape index: {}]
  %s4 = inlined_call_operand.hbm [shape: f32[8,128], index: 4, kind: output, shape index: {}]
  %s5 = sld [smem:[#allocation0]]
  $region42: #{tpu_custom_call.1} parent=0
    _
  %s7 = ssub.s32 1, %s5
  %s8 = scalar_select 0, %s7, %s5
  $region1: #{tpu_custom_call.1} parent=0
    #allocation2 [shape = 'u8[4096]{0}', space=vmem, size = 0x1000, scoped, tag = 'input window, operand 0, single buffered']
    #allocation3 [shape = 's32[1]{0}', space=sflag, size = 0x4, scoped, tag = 'scoped memory for tpu_custom_call.1']
    #allocation4 [shape = 's32[1]{0}', space=sflag, size = 0x4, scoped, tag = 'scoped memory for tpu_custom_call.1']
    #allocation5 [shape = 'u8[196608]{0}', space=vmem, size = 0x30000, scoped, tag = 'input window, operand 1, single buffered']
    #allocation6 [shape = 's32[1]{0}', space=sflag, size = 0x4, scoped, tag = 'scoped memory for tpu_custom_call.1']
    #allocation7 [shape = 'u8[65536]{0}', space=vmem, size = 0x10000, scoped, tag = 'input window, operand 2, single buffered']
    #allocation8 [shape = 'u8[8192]{0}', space=vmem, size = 0x2000, scoped, tag = 'input window, operand 3, single buffered']
    #allocation9 [shape = 's32[1]{0}', space=sflag, size = 0x4, scoped, tag = 'scoped memory for tpu_custom_call.1']
    #allocation10 [shape = 'u8[4096]{0}', space=vmem, size = 0x1000, scoped, tag = 'output window, operand 0, single buffered']
    %9 = vsyncpa [#allocation3], 0
    %10 = vsyncpa [#allocation6], 0
    %11 = vsyncpa [#allocation9], 0
    %12 = vsyncpa [#allocation4], 0
    // Predicated region
    $region2: #{tpu_custom_call.1} parent=1 // pred_check
      _
    $region3: #{tpu_custom_call.1} parent=1 // pred_check_branch
      %14 = sbr.rel (0) target = $region5
    $region4: #{tpu_custom_call.1} parent=1 // pred_region
      %s16 = ssub.s32 128, 128
      %17 = vsyncadd [#allocation3], %s16
      %s19 = sshll.u32 [#allocation2], 4
      %s20 = int_to_ptr.vmem [resolvable:$true] %s19
      %22 = dma.hbm_to_vmem [thread:$0]  %s0, 128, %s20, [#allocation3]
    $region5: #{tpu_custom_call.1} parent=1 // pred_fallthru
      _
    // Predicated region
    $region6: #{tpu_custom_call.1} parent=1 // pred_check
      _
    $region7: #{tpu_custom_call.1} parent=1 // pred_check_branch
      %24 = sbr.rel (0) target = $region9
    $region8: #{tpu_custom_call.1} parent=1 // pred_region
      %s26 = ssub.s32 6144, 6144
      %27 = vsyncadd [#allocation6], %s26
      %s28 = sshll.u32 [#allocation5], 4
      %s29 = int_to_ptr.vmem [resolvable:$true] %s28
      %34 = dma.hbm_to_vmem [thread:$0]  %s1, 6144, %s29, [#allocation6], 128, 128, 8
    $region9: #{tpu_custom_call.1} parent=1 // pred_fallthru
      _
    // Predicated region
    $region10: #{tpu_custom_call.1} parent=1 // pred_check
      _
    $region11: #{tpu_custom_call.1} parent=1 // pred_check_branch
      %36 = sbr.rel (0) target = $region13
    $region12: #{tpu_custom_call.1} parent=1 // pred_region
      %s38 = ssub.s32 2048, 2048
      %39 = vsyncadd [#allocation6], %s38
      %s40 = sshll.u32 [#allocation7], 4
      %s41 = int_to_ptr.vmem [resolvable:$true] %s40
      %46 = dma.hbm_to_vmem [thread:$0]  %s2, 2048, %s41, [#allocation6], 64, 64, 4
    $region13: #{tpu_custom_call.1} parent=1 // pred_fallthru
      _
    // Predicated region
    $region14: #{tpu_custom_call.1} parent=1 // pred_check
      _
    $region15: #{tpu_custom_call.1} parent=1 // pred_check_branch
      %48 = sbr.rel (0) target = $region17
    $region16: #{tpu_custom_call.1} parent=1 // pred_region
      %s50 = ssub.s32 256, 256
      %51 = vsyncadd [#allocation9], %s50
      %s53 = sshll.u32 [#allocation8], 4
      %s54 = int_to_ptr.vmem [resolvable:$true] %s53
      %56 = dma.hbm_to_vmem [thread:$0]  %s3, 256, %s54, [#allocation9]
    $region17: #{tpu_custom_call.1} parent=1 // pred_fallthru
      _
    // Predicated region
    $region18: #{tpu_custom_call.1} parent=1 // pred_check
      _
    $region19: #{tpu_custom_call.1} parent=1 // pred_check_branch
      %58 = sbr.rel (0) target = $region21
    $region20: #{tpu_custom_call.1} parent=1 // pred_region
      %59 = dma.done [#allocation3], 128
    $region21: #{tpu_custom_call.1} parent=1 // pred_fallthru
      _
    // Predicated region
    $region22: #{tpu_custom_call.1} parent=1 // pred_check
      _
    $region23: #{tpu_custom_call.1} parent=1 // pred_check_branch
      %61 = sbr.rel (0) target = $region25
    $region24: #{tpu_custom_call.1} parent=1 // pred_region
      %62 = dma.done [#allocation6], 6144
    $region25: #{tpu_custom_call.1} parent=1 // pred_fallthru
      _
    // Predicated region
    $region26: #{tpu_custom_call.1} parent=1 // pred_check
      _
    $region27: #{tpu_custom_call.1} parent=1 // pred_check_branch
      %64 = sbr.rel (0) target = $region29
    $region28: #{tpu_custom_call.1} parent=1 // pred_region
      %65 = dma.done [#allocation6], 2048
    $region29: #{tpu_custom_call.1} parent=1 // pred_fallthru
      _
    // Predicated region
    $region30: #{tpu_custom_call.1} parent=1 // pred_check
      _
    $region31: #{tpu_custom_call.1} parent=1 // pred_check_branch
      %67 = sbr.rel (0) target = $region33
    $region32: #{tpu_custom_call.1} parent=1 // pred_region
      %68 = dma.done [#allocation9], 256
    $region33: #{tpu_custom_call.1} parent=1 // pred_fallthru
      _
    %v70 = vld [vmem:[#allocation2] sm:$0xff]
    %v71 = vpack.c.bf16 %v70, %v70
    %v72 = vld [vmem:[#allocation5] sm:$0xff]
    %v73 = vld [vmem:[#allocation5 + $0x8] sm:$0xff]
    %v74 = vld [vmem:[#allocation5 + $0x10] sm:$0xff]
    %v75 = vld [vmem:[#allocation5 + $0x18] sm:$0xff]
    %v76 = vld [vmem:[#allocation5 + $0x20] sm:$0xff]
    %v77 = vld [vmem:[#allocation5 + $0x28] sm:$0xff]
    %v78 = vld [vmem:[#allocation5 + $0x30] sm:$0xff]
    %v79 = vld [vmem:[#allocation5 + $0x38] sm:$0xff]
    %v80 = vld [vmem:[#allocation5 + $0x40] sm:$0xff]
    %v81 = vld [vmem:[#allocation5 + $0x48] sm:$0xff]
    %v82 = vld [vmem:[#allocation5 + $0x50] sm:$0xff]
    %v83 = vld [vmem:[#allocation5 + $0x58] sm:$0xff]
    %v84 = vld [vmem:[#allocation5 + $0x60] sm:$0xff]
    %v85 = vld [vmem:[#allocation5 + $0x68] sm:$0xff]
    %v86 = vld [vmem:[#allocation5 + $0x70] sm:$0xff]
    %v87 = vld [vmem:[#allocation5 + $0x78] sm:$0xff]
    %v88 = vld [vmem:[#allocation5 + $0x80] sm:$0xff]
    %v89 = vld [vmem:[#allocation5 + $0x88] sm:$0xff]
    %v90 = vld [vmem:[#allocation5 + $0x90] sm:$0xff]
    %v91 = vld [vmem:[#allocation5 + $0x98] sm:$0xff]
    %v92 = vld [vmem:[#allocation5 + $0xa0] sm:$0xff]
    %v93 = vld [vmem:[#allocation5 + $0xa8] sm:$0xff]
    %v94 = vld [vmem:[#allocation5 + $0xb0] sm:$0xff]
    %v95 = vld [vmem:[#allocation5 + $0xb8] sm:$0xff]
    %v96 = vld [vmem:[#allocation5 + $0xc0] sm:$0xff]
    %v97 = vld [vmem:[#allocation5 + $0xc8] sm:$0xff]
    %v98 = vld [vmem:[#allocation5 + $0xd0] sm:$0xff]
    %v99 = vld [vmem:[#allocation5 + $0xd8] sm:$0xff]
    %v100 = vld [vmem:[#allocation5 + $0xe0] sm:$0xff]
    %v101 = vld [vmem:[#allocation5 + $0xe8] sm:$0xff]
    %v102 = vld [vmem:[#allocation5 + $0xf0] sm:$0xff]
    %v103 = vld [vmem:[#allocation5 + $0xf8] sm:$0xff]
    %v104 = vld [vmem:[#allocation5 + $0x100] sm:$0xff]
    %v105 = vld [vmem:[#allocation5 + $0x108] sm:$0xff]
    %v106 = vld [vmem:[#allocation5 + $0x110] sm:$0xff]
    %v107 = vld [vmem:[#allocation5 + $0x118] sm:$0xff]
    %v108 = vld [vmem:[#allocation5 + $0x120] sm:$0xff]
    %v109 = vld [vmem:[#allocation5 + $0x128] sm:$0xff]
    %v110 = vld [vmem:[#allocation5 + $0x130] sm:$0xff]
    %v111 = vld [vmem:[#allocation5 + $0x138] sm:$0xff]
    %v112 = vld [vmem:[#allocation5 + $0x140] sm:$0xff]
    %v113 = vld [vmem:[#allocation5 + $0x148] sm:$0xff]
    %v114 = vld [vmem:[#allocation5 + $0x150] sm:$0xff]
    %v115 = vld [vmem:[#allocation5 + $0x158] sm:$0xff]
    %v116 = vld [vmem:[#allocation5 + $0x160] sm:$0xff]
    %v117 = vld [vmem:[#allocation5 + $0x168] sm:$0xff]
    %v118 = vld [vmem:[#allocation5 + $0x170] sm:$0xff]
    %v119 = vld [vmem:[#allocation5 + $0x178] sm:$0xff]
    %v120 = vld [vmem:[#allocation7] sm:$0xf]
    %v121 = vld [vmem:[#allocation7 + $0x4] sm:$0xf]
    %v122 = vld [vmem:[#allocation7 + $0x8] sm:$0xf]
    %v123 = vld [vmem:[#allocation7 + $0xc] sm:$0xf]
    %v124 = vld [vmem:[#allocation7 + $0x10] sm:$0xf]
    %v125 = vld [vmem:[#allocation7 + $0x14] sm:$0xf]
    %v126 = vld [vmem:[#allocation7 + $0x18] sm:$0xf]
    %v127 = vld [vmem:[#allocation7 + $0x1c] sm:$0xf]
    %v128 = vld [vmem:[#allocation7 + $0x20] sm:$0xf]
    %v129 = vld [vmem:[#allocation7 + $0x24] sm:$0xf]
    %v130 = vld [vmem:[#allocation7 + $0x28] sm:$0xf]
    %v131 = vld [vmem:[#allocation7 + $0x2c] sm:$0xf]
    %v132 = vld [vmem:[#allocation7 + $0x30] sm:$0xf]
    %v133 = vld [vmem:[#allocation7 + $0x34] sm:$0xf]
    %v134 = vld [vmem:[#allocation7 + $0x38] sm:$0xf]
    %v135 = vld [vmem:[#allocation7 + $0x3c] sm:$0xf]
    %v136 = vld [vmem:[#allocation7 + $0x40] sm:$0xf]
    %v137 = vld [vmem:[#allocation7 + $0x44] sm:$0xf]
    %v138 = vld [vmem:[#allocation7 + $0x48] sm:$0xf]
    %v139 = vld [vmem:[#allocation7 + $0x4c] sm:$0xf]
    %v140 = vld [vmem:[#allocation7 + $0x50] sm:$0xf]
    %v141 = vld [vmem:[#allocation7 + $0x54] sm:$0xf]
    %v142 = vld [vmem:[#allocation7 + $0x58] sm:$0xf]
    %v143 = vld [vmem:[#allocation7 + $0x5c] sm:$0xf]
    %v144 = vld [vmem:[#allocation7 + $0x60] sm:$0xf]
    %v145 = vld [vmem:[#allocation7 + $0x64] sm:$0xf]
    %v146 = vld [vmem:[#allocation7 + $0x68] sm:$0xf]
    %v147 = vld [vmem:[#allocation7 + $0x6c] sm:$0xf]
    %v148 = vld [vmem:[#allocation7 + $0x70] sm:$0xf]
    %v149 = vld [vmem:[#allocation7 + $0x74] sm:$0xf]
    %v150 = vld [vmem:[#allocation7 + $0x78] sm:$0xf]
    %v151 = vld [vmem:[#allocation7 + $0x7c] sm:$0xf]
    %v152 = vld [vmem:[#allocation8] ss:$8 sm:$0x3]
    %s153 = scalar_lea.vmem [#allocation8], 1
    %v154 = vld [vmem:[%s153] ss:$8 sm:$0x3]
    %v155 = vld [vmem:[#allocation8 + $0x2] ss:$0 sm:$0xff]
    %v157 = vlaneseq
    %v158 = vshrl.u32 %v157, 7
    %v159 = vsub.s32 0, %v158
    %v160 = vrot.slane %v152, %v159
    %v161 = vlaneseq
    %v162 = vshrl.u32 %v161, 7
    %v163 = vsub.s32 1, %v162
    %v164 = vrot.slane %v152, %v163
    %v183 = vunpack.c.l.b16 %v72
    %v184 = vunpack.c.h.b16 %v72
    %v185 = vunpack.c.l.b16 %v73
    %v186 = vunpack.c.h.b16 %v73
    %v187 = vunpack.c.l.b16 %v74
    %v188 = vunpack.c.h.b16 %v74
    %v189 = vunpack.c.l.b16 %v75
    %v190 = vunpack.c.h.b16 %v75
    %v191 = vunpack.c.l.b16 %v76
    %v192 = vunpack.c.h.b16 %v76
    %v193 = vunpack.c.l.b16 %v77
    %v194 = vunpack.c.h.b16 %v77
    %v195 = vunpack.c.l.b16 %v78
    %v196 = vunpack.c.h.b16 %v78
    %v197 = vunpack.c.l.b16 %v79
    %v198 = vunpack.c.h.b16 %v79
    %v199 = vunpack.c.l.b16 %v80
    %v200 = vunpack.c.h.b16 %v80
    %v201 = vunpack.c.l.b16 %v81
    %v202 = vunpack.c.h.b16 %v81
    %v203 = vunpack.c.l.b16 %v82
    %v204 = vunpack.c.h.b16 %v82
    %v205 = vunpack.c.l.b16 %v83
    %v206 = vunpack.c.h.b16 %v83
    %v207 = vunpack.c.l.b16 %v84
    %v208 = vunpack.c.h.b16 %v84
    %v209 = vunpack.c.l.b16 %v85
    %v210 = vunpack.c.h.b16 %v85
    %v211 = vunpack.c.l.b16 %v86
    %v212 = vunpack.c.h.b16 %v86
    %v213 = vunpack.c.l.b16 %v87
    %v214 = vunpack.c.h.b16 %v87
    %v215 = vpack.c.b16 %v185, %v183
    %v216 = vpack.c.b16 %v186, %v184
    %v217 = vpack.c.b16 %v189, %v187
    %v218 = vpack.c.b16 %v190, %v188
    %v219 = vpack.c.b16 %v193, %v191
    %v220 = vpack.c.b16 %v194, %v192
    %v221 = vpack.c.b16 %v197, %v195
    %v222 = vpack.c.b16 %v198, %v196
    %v223 = vpack.c.b16 %v201, %v199
    %v224 = vpack.c.b16 %v202, %v200
    %v225 = vpack.c.b16 %v205, %v203
    %v226 = vpack.c.b16 %v206, %v204
    %v227 = vpack.c.b16 %v209, %v207
    %v228 = vpack.c.b16 %v210, %v208
    %v229 = vpack.c.b16 %v213, %v211
    %v230 = vpack.c.b16 %v214, %v212
    %247 = vmatprep.subr.bf16.mxu0 %v230
    %248 = vmatpush1.bf16.msra.mxu0 %v229
    %249 = vmatprep.subr.bf16.mxu0 %v228
    %250 = vmatpush1.bf16.msra.mxu0 %v227
    %251 = vmatprep.subr.bf16.mxu0 %v226
    %252 = vmatpush1.bf16.msra.mxu0 %v225
    %253 = vmatprep.subr.bf16.mxu0 %v224
    %254 = vmatpush1.bf16.msra.mxu0 %v223
    %255 = vmatprep.subr.bf16.mxu0 %v222
    %256 = vmatpush1.bf16.msra.mxu0 %v221
    %257 = vmatprep.subr.bf16.mxu0 %v220
    %258 = vmatpush1.bf16.msra.mxu0 %v219
    %259 = vmatprep.subr.bf16.mxu0 %v218
    %260 = vmatpush1.bf16.msra.mxu0 %v217
    %261 = vmatprep.subr.bf16.mxu0 %v216
    %262 = vmatpush1.bf16.msra.mxu0 %v215
    %263 = vmatprep.subr.bf16.mxu0 0
    %264 = vmatpush2.bf16.msra.mxu0 0
    %265 = vmatprep.subr.bf16.mxu0 0
    %266 = vmatpush2.bf16.msra.mxu0 0
    %267 = vmatprep.subr.bf16.mxu0 0
    %268 = vmatpush2.bf16.msra.mxu0 0
    %269 = vmatprep.subr.bf16.mxu0 0
    %270 = vmatpush2.bf16.msra.mxu0 0
    %271 = vmatprep.subr.bf16.mxu0 0
    %272 = vmatpush2.bf16.msra.mxu0 0
    %273 = vmatprep.subr.bf16.mxu0 0
    %274 = vmatpush2.bf16.msra.mxu0 0
    %275 = vmatprep.subr.bf16.mxu0 0
    %276 = vmatpush2.bf16.msra.mxu0 0
    %277 = vmatprep.subr.bf16.mxu0 0
    %278 = vmatpush2.bf16.msra.mxu0 0
    %279 = vmatprep.mubr.bf16.mxu0 0
    %280 = vmatmul.mubr.bf16.gmra.mxu0 %v71
    %v281 = vpop.f32.mrf.mxu0
    %v282 = vadd.f32 %v160, %v281
    %v283 = vpop.f32.mrf.mxu0
    %v284 = vadd.f32 %v164, %v283
    %v285 = vpop.f32.mrf.mxu0
    %v286 = vpop.f32.mrf.mxu0
    %287 = vdwg.mxu0
    %v288 = vmax.f32 %v282, 0.0
    %v289 = vmax.f32 %v284, 0.0
    %v290 = vpack.c.bf16 %v288, %v288
    %v291 = vpack.c.bf16 %v289, %v289
    %v293 = vlaneseq
    %v294 = vshrl.u32 %v293, 7
    %v295 = vsub.s32 0, %v294
    %v296 = vrot.slane %v154, %v295
    %v297 = vlaneseq
    %v298 = vshrl.u32 %v297, 7
    %v299 = vsub.s32 1, %v298
    %v300 = vrot.slane %v154, %v299
    %v335 = vunpack.c.l.b16 %v88
    %v336 = vunpack.c.h.b16 %v88
    %v337 = vunpack.c.l.b16 %v89
    %v338 = vunpack.c.h.b16 %v89
    %v339 = vunpack.c.l.b16 %v90
    %v340 = vunpack.c.h.b16 %v90
    %v341 = vunpack.c.l.b16 %v91
    %v342 = vunpack.c.h.b16 %v91
    %v343 = vunpack.c.l.b16 %v92
    %v344 = vunpack.c.h.b16 %v92
    %v345 = vunpack.c.l.b16 %v93
    %v346 = vunpack.c.h.b16 %v93
    %v347 = vunpack.c.l.b16 %v94
    %v348 = vunpack.c.h.b16 %v94
    %v349 = vunpack.c.l.b16 %v95
    %v350 = vunpack.c.h.b16 %v95
    %v351 = vunpack.c.l.b16 %v96
    %v352 = vunpack.c.h.b16 %v96
    %v353 = vunpack.c.l.b16 %v97
    %v354 = vunpack.c.h.b16 %v97
    %v355 = vunpack.c.l.b16 %v98
    %v356 = vunpack.c.h.b16 %v98
    %v357 = vunpack.c.l.b16 %v99
    %v358 = vunpack.c.h.b16 %v99
    %v359 = vunpack.c.l.b16 %v100
    %v360 = vunpack.c.h.b16 %v100
    %v361 = vunpack.c.l.b16 %v101
    %v362 = vunpack.c.h.b16 %v101
    %v363 = vunpack.c.l.b16 %v102
    %v364 = vunpack.c.h.b16 %v102
    %v365 = vunpack.c.l.b16 %v103
    %v366 = vunpack.c.h.b16 %v103
    %v367 = vunpack.c.l.b16 %v104
    %v368 = vunpack.c.h.b16 %v104
    %v369 = vunpack.c.l.b16 %v105
    %v370 = vunpack.c.h.b16 %v105
    %v371 = vunpack.c.l.b16 %v106
    %v372 = vunpack.c.h.b16 %v106
    %v373 = vunpack.c.l.b16 %v107
    %v374 = vunpack.c.h.b16 %v107
    %v375 = vunpack.c.l.b16 %v108
    %v376 = vunpack.c.h.b16 %v108
    %v377 = vunpack.c.l.b16 %v109
    %v378 = vunpack.c.h.b16 %v109
    %v379 = vunpack.c.l.b16 %v110
    %v380 = vunpack.c.h.b16 %v110
    %v381 = vunpack.c.l.b16 %v111
    %v382 = vunpack.c.h.b16 %v111
    %v383 = vunpack.c.l.b16 %v112
    %v384 = vunpack.c.h.b16 %v112
    %v385 = vunpack.c.l.b16 %v113
    %v386 = vunpack.c.h.b16 %v113
    %v387 = vunpack.c.l.b16 %v114
    %v388 = vunpack.c.h.b16 %v114
    %v389 = vunpack.c.l.b16 %v115
    %v390 = vunpack.c.h.b16 %v115
    %v391 = vunpack.c.l.b16 %v116
    %v392 = vunpack.c.h.b16 %v116
    %v393 = vunpack.c.l.b16 %v117
    %v394 = vunpack.c.h.b16 %v117
    %v395 = vunpack.c.l.b16 %v118
    %v396 = vunpack.c.h.b16 %v118
    %v397 = vunpack.c.l.b16 %v119
    %v398 = vunpack.c.h.b16 %v119
    %v399 = vpack.c.b16 %v337, %v335
    %v400 = vpack.c.b16 %v338, %v336
    %v401 = vpack.c.b16 %v341, %v339
    %v402 = vpack.c.b16 %v342, %v340
    %v403 = vpack.c.b16 %v345, %v343
    %v404 = vpack.c.b16 %v346, %v344
    %v405 = vpack.c.b16 %v349, %v347
    %v406 = vpack.c.b16 %v350, %v348
    %v407 = vpack.c.b16 %v353, %v351
    %v408 = vpack.c.b16 %v354, %v352
    %v409 = vpack.c.b16 %v357, %v355
    %v410 = vpack.c.b16 %v358, %v356
    %v411 = vpack.c.b16 %v361, %v359
    %v412 = vpack.c.b16 %v362, %v360
    %v413 = vpack.c.b16 %v365, %v363
    %v414 = vpack.c.b16 %v366, %v364
    %v415 = vpack.c.b16 %v369, %v367
    %v416 = vpack.c.b16 %v370, %v368
    %v417 = vpack.c.b16 %v373, %v371
    %v418 = vpack.c.b16 %v374, %v372
    %v419 = vpack.c.b16 %v377, %v375
    %v420 = vpack.c.b16 %v378, %v376
    %v421 = vpack.c.b16 %v381, %v379
    %v422 = vpack.c.b16 %v382, %v380
    %v423 = vpack.c.b16 %v385, %v383
    %v424 = vpack.c.b16 %v386, %v384
    %v425 = vpack.c.b16 %v389, %v387
    %v426 = vpack.c.b16 %v390, %v388
    %v427 = vpack.c.b16 %v393, %v391
    %v428 = vpack.c.b16 %v394, %v392
    %v429 = vpack.c.b16 %v397, %v395
    %v430 = vpack.c.b16 %v398, %v396
    %463 = vmatprep.subr.bf16.mxu0 %v414
    %464 = vmatpush1.bf16.msra.mxu0 %v413
    %465 = vmatprep.subr.bf16.mxu0 %v412
    %466 = vmatpush1.bf16.msra.mxu0 %v411
    %467 = vmatprep.subr.bf16.mxu0 %v410
    %468 = vmatpush1.bf16.msra.mxu0 %v409
    %469 = vmatprep.subr.bf16.mxu0 %v408
    %470 = vmatpush1.bf16.msra.mxu0 %v407
    %471 = vmatprep.subr.bf16.mxu0 %v406
    %472 = vmatpush1.bf16.msra.mxu0 %v405
    %473 = vmatprep.subr.bf16.mxu0 %v404
    %474 = vmatpush1.bf16.msra.mxu0 %v403
    %475 = vmatprep.subr.bf16.mxu0 %v402
    %476 = vmatpush1.bf16.msra.mxu0 %v401
    %477 = vmatprep.subr.bf16.mxu0 %v400
    %478 = vmatpush1.bf16.msra.mxu0 %v399
    %479 = vmatprep.subr.bf16.mxu0 %v430
    %480 = vmatpush2.bf16.msra.mxu0 %v429
    %481 = vmatprep.subr.bf16.mxu0 %v428
    %482 = vmatpush2.bf16.msra.mxu0 %v427
    %483 = vmatprep.subr.bf16.mxu0 %v426
    %484 = vmatpush2.bf16.msra.mxu0 %v425
    %485 = vmatprep.subr.bf16.mxu0 %v424
    %486 = vmatpush2.bf16.msra.mxu0 %v423
    %487 = vmatprep.subr.bf16.mxu0 %v422
    %488 = vmatpush2.bf16.msra.mxu0 %v421
    %489 = vmatprep.subr.bf16.mxu0 %v420
    %490 = vmatpush2.bf16.msra.mxu0 %v419
    %491 = vmatprep.subr.bf16.mxu0 %v418
    %492 = vmatpush2.bf16.msra.mxu0 %v417
    %493 = vmatprep.subr.bf16.mxu0 %v416
    %494 = vmatpush2.bf16.msra.mxu0 %v415
    %495 = vmatprep.mubr.bf16.mxu0 %v291
    %496 = vmatmul.mubr.bf16.gmra.mxu0 %v290
    %v497 = vpop.f32.mrf.mxu0
    %v498 = vadd.f32 %v296, %v497
    %v499 = vpop.f32.mrf.mxu0
    %v500 = vadd.f32 %v300, %v499
    %v501 = vpop.f32.mrf.mxu0
    %v502 = vpop.f32.mrf.mxu0
    %503 = vdwg.mxu0
    %v504 = vmax.f32 %v498, 0.0
    %v505 = vmax.f32 %v500, 0.0
    %v506 = vpack.c.bf16 %v504, %v504
    %v507 = vpack.c.bf16 %v505, %v505
    %v540 = vunpack.c.l.b16 %v120
    %v541 = vunpack.c.l.b16 %v121
    %v542 = vunpack.c.l.b16 %v122
    %v543 = vunpack.c.l.b16 %v123
    %v544 = vunpack.c.l.b16 %v124
    %v545 = vunpack.c.l.b16 %v125
    %v546 = vunpack.c.l.b16 %v126
    %v547 = vunpack.c.l.b16 %v127
    %v548 = vunpack.c.l.b16 %v128
    %v549 = vunpack.c.l.b16 %v129
    %v550 = vunpack.c.l.b16 %v130
    %v551 = vunpack.c.l.b16 %v131
    %v552 = vunpack.c.l.b16 %v132
    %v553 = vunpack.c.l.b16 %v133
    %v554 = vunpack.c.l.b16 %v134
    %v555 = vunpack.c.l.b16 %v135
    %v556 = vunpack.c.l.b16 %v136
    %v557 = vunpack.c.l.b16 %v137
    %v558 = vunpack.c.l.b16 %v138
    %v559 = vunpack.c.l.b16 %v139
    %v560 = vunpack.c.l.b16 %v140
    %v561 = vunpack.c.l.b16 %v141
    %v562 = vunpack.c.l.b16 %v142
    %v563 = vunpack.c.l.b16 %v143
    %v564 = vunpack.c.l.b16 %v144
    %v565 = vunpack.c.l.b16 %v145
    %v566 = vunpack.c.l.b16 %v146
    %v567 = vunpack.c.l.b16 %v147
    %v568 = vunpack.c.l.b16 %v148
    %v569 = vunpack.c.l.b16 %v149
    %v570 = vunpack.c.l.b16 %v150
    %v571 = vunpack.c.l.b16 %v151
    %v572 = vpack.c.b16 %v541, %v540
    %v573 = vpack.c.b16 %v543, %v542
    %v574 = vpack.c.b16 %v545, %v544
    %v575 = vpack.c.b16 %v547, %v546
    %v576 = vpack.c.b16 %v549, %v548
    %v577 = vpack.c.b16 %v551, %v550
    %v578 = vpack.c.b16 %v553, %v552
    %v579 = vpack.c.b16 %v555, %v554
    %v580 = vpack.c.b16 %v557, %v556
    %v581 = vpack.c.b16 %v559, %v558
    %v582 = vpack.c.b16 %v561, %v560
    %v583 = vpack.c.b16 %v563, %v562
    %v584 = vpack.c.b16 %v565, %v564
    %v585 = vpack.c.b16 %v567, %v566
    %v586 = vpack.c.b16 %v569, %v568
    %v587 = vpack.c.b16 %v571, %v570
    %604 = vmatprep.subr.bf16.mxu0 0
    %605 = vmatpush1.bf16.msra.mxu0 %v579
    %606 = vmatprep.subr.bf16.mxu0 0
    %607 = vmatpush1.bf16.msra.mxu0 %v578
    %608 = vmatprep.subr.bf16.mxu0 0
    %609 = vmatpush1.bf16.msra.mxu0 %v577
    %610 = vmatprep.subr.bf16.mxu0 0
    %611 = vmatpush1.bf16.msra.mxu0 %v576
    %612 = vmatprep.subr.bf16.mxu0 0
    %613 = vmatpush1.bf16.msra.mxu0 %v575
    %614 = vmatprep.subr.bf16.mxu0 0
    %615 = vmatpush1.bf16.msra.mxu0 %v574
    %616 = vmatprep.subr.bf16.mxu0 0
    %617 = vmatpush1.bf16.msra.mxu0 %v573
    %618 = vmatprep.subr.bf16.mxu0 0
    %619 = vmatpush1.bf16.msra.mxu0 %v572
    %620 = vmatprep.subr.bf16.mxu0 0
    %621 = vmatpush2.bf16.msra.mxu0 %v587
    %622 = vmatprep.subr.bf16.mxu0 0
    %623 = vmatpush2.bf16.msra.mxu0 %v586
    %624 = vmatprep.subr.bf16.mxu0 0
    %625 = vmatpush2.bf16.msra.mxu0 %v585
    %626 = vmatprep.subr.bf16.mxu0 0
    %627 = vmatpush2.bf16.msra.mxu0 %v584
    %628 = vmatprep.subr.bf16.mxu0 0
    %629 = vmatpush2.bf16.msra.mxu0 %v583
    %630 = vmatprep.subr.bf16.mxu0 0
    %631 = vmatpush2.bf16.msra.mxu0 %v582
    %632 = vmatprep.subr.bf16.mxu0 0
    %633 = vmatpush2.bf16.msra.mxu0 %v581
    %634 = vmatprep.subr.bf16.mxu0 0
    %635 = vmatpush2.bf16.msra.mxu0 %v580
    %636 = vmatprep.mubr.bf16.mxu0 %v507
    %637 = vmatmul.mubr.bf16.gmra.mxu0 %v506
    %v638 = vpop.f32.mrf.mxu0
    %v639 = vadd.f32 %v155, %v638
    %v640 = vpop.f32.mrf.mxu0
    %v641 = vpop.f32.mrf.mxu0
    %v642 = vpop.f32.mrf.mxu0
    %643 = vdwg.mxu0
    %v644 = vld [vmem:[#allocation8 + $0x3] ss:$0 sm:$0xff]
    %v645 = vld [vmem:[#allocation8 + $0x4] ss:$0 sm:$0xff]
    %v646 = vld [vmem:[#allocation8 + $0x5] ss:$0 sm:$0xff]
    %v647 = vsub.f32 %v644, %v639
    %v648 = vmax.f32 %v647, 0.0
    %v649 = vand.u32 2147483647, %v647
    %v650 = vsub.f32 0.0, %v649
    %v651 = vmul.f32 %v650, 1.442695
    %v652 = vpow.pop %v651
    %v653 = vadd.f32 %v652, 1.0
    %v654 = vlog2.pop %v653
    %v655 = vmul.f32 %v654, 0.6931472
    %v656 = vmul.f32 -0.5, %v652
    %v657 = vadd.f32 %v656, 1.0
    %v658 = vmul.f32 %v657, %v652
    %v659 = vand.u32 2147483647, %v652
    %vm660 = vcmp.lt.f32.partialorder %v659, 0.0004427343
    %v661 = vsel %vm660, %v658, %v655
    %v662 = vadd.f32 %v648, %v661
    %v663 = vsub.f32 %v644, %v662
    %v664 = vsub.f32 %v663, %v645
    %v665 = vmax.f32 %v664, 0.0
    %v666 = vand.u32 2147483647, %v664
    %v667 = vsub.f32 0.0, %v666
    %v668 = vmul.f32 %v667, 1.442695
    %v669 = vpow.pop %v668
    %v670 = vadd.f32 %v669, 1.0
    %v671 = vlog2.pop %v670
    %v672 = vmul.f32 %v671, 0.6931472
    %v673 = vmul.f32 -0.5, %v669
    %v674 = vadd.f32 %v673, 1.0
    %v675 = vmul.f32 %v674, %v669
    %v676 = vand.u32 2147483647, %v669
    %vm677 = vcmp.lt.f32.partialorder %v676, 0.0004427343
    %v678 = vsel %vm677, %v675, %v672
    %v679 = vadd.f32 %v665, %v678
    %v680 = vadd.f32 %v645, %v679
    %vm681 = vcmp.ne.f32.partialorder %v646, 0.0
    %v682 = vsel %vm681, 1, 0
    %vm683 = vcmp.eq.s32.totalorder %v682, 1
    %v684 = vsel %vm683, %v680, %v639
    %685 = vst [vmem:[#allocation10] sm:$0xff] %v684
    // Predicated region
    $region34: #{tpu_custom_call.1} parent=1 // pred_check
      _
    $region35: #{tpu_custom_call.1} parent=1 // pred_check_branch
      %687 = sbr.rel (0) target = $region37
    $region36: #{tpu_custom_call.1} parent=1 // pred_region
      %s689 = ssub.s32 128, 128
      %690 = vsyncadd [#allocation4], %s689
      %s692 = sshll.u32 [#allocation10], 4
      %s693 = int_to_ptr.vmem [resolvable:$true] %s692
      %695 = dma.vmem_to_hbm [thread:$0]  %s693, 128, %s4, [#allocation4]
    $region37: #{tpu_custom_call.1} parent=1 // pred_fallthru
      _
    // Predicated region
    $region38: #{tpu_custom_call.1} parent=1 // pred_check
      _
    $region39: #{tpu_custom_call.1} parent=1 // pred_check_branch
      %697 = sbr.rel (0) target = $region41
    $region40: #{tpu_custom_call.1} parent=1 // pred_region
      %698 = dma.done [#allocation4], 128
    $region41: #{tpu_custom_call.1} parent=1 // pred_fallthru
      _
    %699 = vsyncpa [#allocation3], 1
    %700 = vsyncpa [#allocation6], 1
    %701 = vsyncpa [#allocation9], 1
    %702 = vsyncpa [#allocation4], 1

</llo_original>
